<compile_context>
chip_gen: v5e
topology: v5e:2x2
jax: 0.10.0
libtpu: 0.0.40
codegen_flags: <defaults>
</compile_context>

<pallas_src>
import jax
import jax.numpy as jnp
from jax.experimental import pallas as pl
from jax.experimental.pallas import tpu as pltpu


def attention_pair_kernel(m_ref, v_ref, lens_ref, wm_ref, wv_ref, wa_ref,
                          rep_ref, attn_ref):
    tile_b, T = attn_ref.shape
    Dbid = rep_ref.shape[1]

    mat = m_ref[...]                                   # [tile_b*T, Dbid], stream dtype
    vec = v_ref[...]                                   # [tile_b, Dv], f32

    # linear_mat over all (b, t) rows: one big MXU matmul (bf16 in, f32 acc).
    hm = jnp.dot(mat, wm_ref[...], preferred_element_type=jnp.float32)   # [tile_b*T, Da]
    # linear_vec: tiny matmul, stays f32.
    hv = jnp.dot(vec, wv_ref[...], preferred_element_type=jnp.float32)   # [tile_b, Da]

    # relu(t1.unsqueeze(1) + t2): broadcast add over the time dim, all f32.
    h = hm.reshape(tile_b, T, -1) + hv[:, None, :]     # [tile_b, T, Da]
    h = jnp.maximum(h, 0.0)

    # linear_attn -> per-(b, t) logit (VPU mul + lane reduce on the XLU).
    logits = jnp.sum(h * wa_ref[...], axis=-1)         # [tile_b, T]

    # Length-masked softmax.  Per-row max subtraction is mathematically identical
    # to the reference's global max (softmax is shift-invariant per row) and keeps
    # batch rows independent, so batch tiling is exact.
    lens = lens_ref[...]                               # [tile_b, 1] int32
    pos = jax.lax.broadcasted_iota(jnp.int32, (tile_b, T), 1)
    mask = pos < lens                                  # [tile_b, T]
    m = jnp.max(logits, axis=-1, keepdims=True)
    unnorm = jnp.exp(logits - m)
    masked = jnp.where(mask, unnorm, 0.0)
    denom = jnp.sum(masked, axis=-1, keepdims=True)    # [tile_b, 1]
    # Guard: length==0 rows (and garbage rows in a padded last block) give
    # denom == 0 -> Inf/NaN; clamp to 1 so they produce zeros instead.
    # TODO(synk): the PyTorch reference propagates NaN for length==0; drop this
    # guard if exact NaN parity is required.
    denom = jnp.where(denom > 0.0, denom, 1.0)
    attn = masked / denom                              # exact divide (hidden under DMA)

    # Weighted sum over time: VPU multiply + sublane reduce.  These slots have
    # slack in a mem-bound kernel; the MXU gains nothing from M=1 batched matmuls.
    mat3 = mat.astype(jnp.float32).reshape(tile_b, T, Dbid)
    rep = jnp.sum(mat3 * attn[:, :, None], axis=1)     # [tile_b, Dbid]

    rep_ref[...] = rep.astype(rep_ref.dtype)
    attn_ref[...] = attn.astype(attn_ref.dtype)


def prepare_attention_pair_params(wv, wm, wa, stream_dtype=jnp.bfloat16):
    """Pre-transpose the nn.Linear weights ONCE, outside the call path.

    wv: [Da, Dv], wm: [Da, Dbid], wa: [1, Da]  (nn.Linear weight layout).
    wm^T is cast to `stream_dtype` (it pairs with the streamed matrix on the MXU);
    wv^T and wa stay f32 (tiny, and the elementwise tail is f32).
    """
    wv_t = wv.T.astype(jnp.float32)               # [Dv, Da]
    wm_t = wm.T.astype(stream_dtype)              # [Dbid, Da]
    wa_row = wa.reshape(1, -1).astype(jnp.float32)  # [1, Da]
    return wv_t, wm_t, wa_row


def _round_up(x, m):
    return ((x + m - 1) // m) * m


def attention_pair(vector, matrix, lengths, wv_t, wm_t, wa_row, *,
                   block_b=2048, min_grid_steps=2,
                   stream_dtype=jnp.bfloat16,
                   vmem_limit_bytes=48 * 1024 * 1024):
    """Forward pass of AttentionPair.

    vector [B, Dv], matrix [B, T, Dbid], lengths [B] -> (rep [B, Dbid], attn [B, T]).
    """
    B, Dv = vector.shape
    _, T, Dbid = matrix.shape
    Da = wa_row.shape[1]
    assert wm_t.shape == (Dbid, Da) and wv_t.shape == (Dv, Da)

    # Flatten the time dim into rows (free reshape, no broadcast/concat) and cast
    # the dominant stream to the MXU input dtype (bf16 halves HBM bytes; the f32
    # accumulation + f32 elementwise tail in the kernel keep numerics tight).
    mat_flat = matrix.reshape(B * T, Dbid).astype(stream_dtype)
    wm_t = wm_t.astype(stream_dtype)
    vec = vector.astype(jnp.float32)
    lens2d = lengths.astype(jnp.int32).reshape(B, 1)

    # Batch tile: large enough to amortize the ~0.35 us per-grid-step overhead
    # (~1 MiB bf16 matrix tile at tile_b=2048, T=8, Dbid=32), multiple of 8, and
    # capped so the grid has >= min_grid_steps steps (feeds both v7x TCs).
    # Per-step VMEM ~= 2x(matrix tile) + 2x(vector tile) + f32 intermediates +
    # 2x(output tiles) -- a few MiB at the defaults, well under the 48 MiB limit
    # (v7x: 64 MiB physical; v5e/v6e: 128 MiB, can raise block_b + the limit).
    if B <= 8:
        tile_b = B                       # tiny call: single step, full-dim blocks
    else:
        tile_b = min(block_b, _round_up(pl.cdiv(B, min_grid_steps), 8))
        tile_b = max(8, tile_b)
    grid = (pl.cdiv(B, tile_b),)

    rep, attn = pl.pallas_call(
        attention_pair_kernel,
        out_shape=(jax.ShapeDtypeStruct((B, Dbid), jnp.float32),
                   jax.ShapeDtypeStruct((B, T), jnp.float32)),
        grid=grid,
        in_specs=[
            pl.BlockSpec((tile_b * T, Dbid), lambda i: (i, 0)),  # matrix, streamed
            pl.BlockSpec((tile_b, Dv), lambda i: (i, 0)),        # vector, streamed
            pl.BlockSpec((tile_b, 1), lambda i: (i, 0)),         # lengths
            pl.BlockSpec((Dbid, Da), lambda i: (0, 0)),          # wm^T (resident)
            pl.BlockSpec((Dv, Da), lambda i: (0, 0)),            # wv^T (resident)
            pl.BlockSpec((1, Da), lambda i: (0, 0)),             # wa row (resident)
        ],
        out_specs=(
            pl.BlockSpec((tile_b, Dbid), lambda i: (i, 0)),
            pl.BlockSpec((tile_b, T), lambda i: (i, 0)),
        ),
        compiler_params=pltpu.CompilerParams(
            dimension_semantics=("parallel",),     # shard the batch axis across TCs
            vmem_limit_bytes=vmem_limit_bytes,
        ),
    )(mat_flat, vec, lens2d, wm_t, wv_t, wa_row)
    return rep, attn


def reference(vector, matrix, lengths, wv, wm, wa):
    t1 = vector @ wv.T
    t2 = jnp.einsum('btd,ad->bta', matrix, wm)
    t3 = jax.nn.relu(t1[:, None, :] + t2)
    logits = jnp.einsum('bta,oa->bto', t3, wa)[..., 0]
    unnorm = jnp.exp(logits - logits.max())          # global max, as in the torch code
    T = matrix.shape[1]
    mask = jnp.arange(T)[None, :] < lengths[:, None]
    masked = jnp.where(mask, unnorm, 0.0)
    attn = masked / masked.sum(axis=1, keepdims=True)
    rep = (matrix * attn[..., None]).sum(axis=1)
    return rep, attn


if __name__ == "__main__":
    # Module config: dim_vect=32, dim_attn=16, flag_bid=True -> dim_attn_bid=32.
    dim_vect, dim_attn, flag_bid = 32, 16, True
    dim_attn_bid = dim_attn * (2 if flag_bid else 1)
    T = 8

    key = jax.random.PRNGKey(0)
    k1, k2, k3, k4, k5, k6, k7 = jax.random.split(key, 7)

    def init_linear(k, out_f, in_f):
        bound = 1.0 / jnp.sqrt(in_f)
        return jax.random.uniform(k, (out_f, in_f), jnp.float32, -bound, bound)

    wv = init_linear(k1, dim_attn, dim_vect)        # linear_vec.weight  [16, 32]
    wm = init_linear(k2, dim_attn, dim_attn_bid)    # linear_mat.weight  [16, 32]
    wa = init_linear(k3, 1, dim_attn)               # linear_attn.weight [1, 16]

    # --- Test 1: tiny batch, f32 streaming -> exact parity with the reference. ---
    B1 = 2
    vector1 = jax.random.normal(k4, (B1, dim_vect), jnp.float32)
    matrix1 = jax.random.normal(k5, (B1, T, dim_attn_bid), jnp.float32)
    lengths1 = jnp.array([5, 8], dtype=jnp.int32)

    wv_t32, wm_t32, wa_row = prepare_attention_pair_params(wv, wm, wa, jnp.float32)
    rep1, attn1 = attention_pair(vector1, matrix1, lengths1, wv_t32, wm_t32, wa_row,
                                 stream_dtype=jnp.float32)
    jax.block_until_ready((rep1, attn1))
    rep1_ref, attn1_ref = reference(vector1, matrix1, lengths1, wv, wm, wa)
    assert jnp.allclose(rep1, rep1_ref, atol=1e-5, rtol=1e-5), "rep mismatch (f32)"
    assert jnp.allclose(attn1, attn1_ref, atol=1e-5, rtol=1e-5), "attn mismatch (f32)"

    # --- Test 2: multi-step grid + default bf16 streaming (small block_b forces
    #     grid=(4,) at B=32 so the pipelined/parallel path is exercised). ---
    B2 = 32
    vector2 = jax.random.normal(k6, (B2, dim_vect), jnp.float32)
    matrix2 = jax.random.normal(k7, (B2, T, dim_attn_bid), jnp.float32)
    lengths2 = (jnp.arange(B2, dtype=jnp.int32) % T) + 1

    wv_t16, wm_t16, _ = prepare_attention_pair_params(wv, wm, wa, jnp.bfloat16)
    rep2, attn2 = attention_pair(vector2, matrix2, lengths2, wv_t16, wm_t16, wa_row,
                                 block_b=8)
    jax.block_until_ready((rep2, attn2))
    rep2_ref, attn2_ref = reference(vector2, matrix2, lengths2, wv, wm, wa)
    # bf16 streaming of matrix / wm^T quantizes inputs to ~3 significant digits.
    assert jnp.allclose(rep2, rep2_ref, atol=3e-2, rtol=3e-2), "rep mismatch (bf16)"
    assert jnp.allclose(attn2, attn2_ref, atol=3e-2, rtol=3e-2), "attn mismatch (bf16)"

    print("KERNEL_OK")
</pallas_src>

<mosaic_0001>
module attributes {stable_mosaic.version = 11 : i64} {
  func.func @attention_pair_kernel(%arg0: i32, %arg1: memref<16x32xf32, #tpu.memory_space<vmem>>, %arg2: memref<2x32xf32, #tpu.memory_space<vmem>>, %arg3: memref<2x1xi32, #tpu.memory_space<vmem>>, %arg4: memref<32x16xf32, #tpu.memory_space<vmem>>, %arg5: memref<32x16xf32, #tpu.memory_space<vmem>>, %arg6: memref<1x16xf32, #tpu.memory_space<vmem>>, %arg7: memref<2x32xf32, #tpu.memory_space<vmem>>, %arg8: memref<2x8xf32, #tpu.memory_space<vmem>>) attributes {dimension_semantics = [#tpu.dimension_semantics<parallel>], iteration_bounds = array<i64: 1>, scalar_prefetch = 0 : i64, scratch_operands = 0 : i64, tpu.core_type = #tpu.core_type<tc>, window_params = [{transform_indices = @transform_0, window_bounds = array<i64: 16, 32>}, {transform_indices = @transform_1, window_bounds = array<i64: 2, 32>}, {transform_indices = @transform_2, window_bounds = array<i64: 2, 1>}, {pipeline_mode = #tpu.pipeline_mode<synchronous>, transform_indices = @transform_3, window_bounds = array<i64: 32, 16>}, {pipeline_mode = #tpu.pipeline_mode<synchronous>, transform_indices = @transform_4, window_bounds = array<i64: 32, 16>}, {pipeline_mode = #tpu.pipeline_mode<synchronous>, transform_indices = @transform_5, window_bounds = array<i64: 1, 16>}, {transform_indices = @transform_6, window_bounds = array<i64: 2, 32>}, {transform_indices = @transform_7, window_bounds = array<i64: 2, 8>}]} {
    %c0 = arith.constant 0 : index
    %c0_0 = arith.constant 0 : index
    %0 = vector.load %arg1[%c0, %c0_0] : memref<16x32xf32, #tpu.memory_space<vmem>>, vector<16x32xf32>
    %c0_1 = arith.constant 0 : index
    %c0_2 = arith.constant 0 : index
    %1 = vector.load %arg2[%c0_1, %c0_2] : memref<2x32xf32, #tpu.memory_space<vmem>>, vector<2x32xf32>
    %c0_3 = arith.constant 0 : index
    %c0_4 = arith.constant 0 : index
    %2 = vector.load %arg4[%c0_3, %c0_4] : memref<32x16xf32, #tpu.memory_space<vmem>>, vector<32x16xf32>
    %cst = arith.constant dense<0.000000e+00> : vector<16x16xf32>
    %3 = tpu.matmul %0, %2, %cst {dimension_numbers = #tpu.dot_dimension_numbers<[1], [0], [0], [1], [0, 0, 1, 1], [], []>} : vector<16x32xf32>, vector<32x16xf32>, vector<16x16xf32> -> vector<16x16xf32>
    %c0_5 = arith.constant 0 : index
    %c0_6 = arith.constant 0 : index
    %4 = vector.load %arg5[%c0_5, %c0_6] : memref<32x16xf32, #tpu.memory_space<vmem>>, vector<32x16xf32>
    %cst_7 = arith.constant dense<0.000000e+00> : vector<2x16xf32>
    %5 = tpu.matmul %1, %4, %cst_7 {dimension_numbers = #tpu.dot_dimension_numbers<[1], [0], [0], [1], [0, 0, 1, 1], [], []>} : vector<2x32xf32>, vector<32x16xf32>, vector<2x16xf32> -> vector<2x16xf32>
    %6 = vector.shape_cast %3 : vector<16x16xf32> to vector<2x8x16xf32>
    %7 = vector.shape_cast %5 : vector<2x16xf32> to vector<2x1x16xf32>
    %8 = vector.broadcast %7 : vector<2x1x16xf32> to vector<2x8x16xf32>
    %9 = arith.addf %6, %8 : vector<2x8x16xf32>
    %cst_8 = arith.constant 0.000000e+00 : f32
    %10 = vector.broadcast %cst_8 : f32 to vector<2x8x16xf32>
    %11 = arith.maximumf %9, %10 : vector<2x8x16xf32>
    %c0_9 = arith.constant 0 : index
    %c0_10 = arith.constant 0 : index
    %12 = vector.load %arg6[%c0_9, %c0_10] : memref<1x16xf32, #tpu.memory_space<vmem>>, vector<1x16xf32>
    %13 = vector.shape_cast %12 : vector<1x16xf32> to vector<1x1x16xf32>
    %14 = vector.broadcast %13 : vector<1x1x16xf32> to vector<2x8x16xf32>
    %15 = arith.mulf %11, %14 : vector<2x8x16xf32>
    %cst_11 = arith.constant dense<0.000000e+00> : vector<2x8xf32>
    %16 = vector.multi_reduction <add>, %15, %cst_11 [2] : vector<2x8x16xf32> to vector<2x8xf32>
    %c0_12 = arith.constant 0 : index
    %c0_13 = arith.constant 0 : index
    %17 = vector.load %arg3[%c0_12, %c0_13] : memref<2x1xi32, #tpu.memory_space<vmem>>, vector<2x1xi32>
    %18 = tpu.iota {dimensions = array<i32: 1>} : vector<2x8xi32>
    %19 = vector.broadcast %17 : vector<2x1xi32> to vector<2x8xi32>
    %20 = arith.cmpi slt, %18, %19 : vector<2x8xi32>
    %cst_14 = arith.constant dense<0xFF800000> : vector<2xf32>
    %21 = vector.multi_reduction <maximumf>, %16, %cst_14 [1] : vector<2x8xf32> to vector<2xf32>
    %22 = vector.shape_cast %21 : vector<2xf32> to vector<2x1xf32>
    %23 = vector.broadcast %22 : vector<2x1xf32> to vector<2x8xf32>
    %24 = arith.subf %16, %23 : vector<2x8xf32>
    %25 = math.exp %24 : vector<2x8xf32>
    %cst_15 = arith.constant 0.000000e+00 : f32
    %26 = vector.broadcast %cst_15 : f32 to vector<2x8xf32>
    %27 = arith.select %20, %25, %26 : vector<2x8xi1>, vector<2x8xf32>
    %cst_16 = arith.constant dense<0.000000e+00> : vector<2xf32>
    %28 = vector.multi_reduction <add>, %27, %cst_16 [1] : vector<2x8xf32> to vector<2xf32>
    %29 = vector.shape_cast %28 : vector<2xf32> to vector<2x1xf32>
    %cst_17 = arith.constant 0.000000e+00 : f32
    %30 = vector.broadcast %cst_17 : f32 to vector<2x1xf32>
    %31 = arith.cmpf ogt, %29, %30 : vector<2x1xf32>
    %cst_18 = arith.constant 1.000000e+00 : f32
    %32 = vector.broadcast %cst_18 : f32 to vector<2x1xf32>
    %33 = arith.select %31, %29, %32 : vector<2x1xi1>, vector<2x1xf32>
    %34 = vector.broadcast %33 : vector<2x1xf32> to vector<2x8xf32>
    %35 = arith.divf %27, %34 : vector<2x8xf32>
    %36 = vector.shape_cast %0 : vector<16x32xf32> to vector<2x8x32xf32>
    %37 = vector.shape_cast %35 : vector<2x8xf32> to vector<2x8x1xf32>
    %38 = vector.broadcast %37 : vector<2x8x1xf32> to vector<2x8x32xf32>
    %39 = arith.mulf %36, %38 : vector<2x8x32xf32>
    %cst_19 = arith.constant dense<0.000000e+00> : vector<2x32xf32>
    %40 = vector.multi_reduction <add>, %39, %cst_19 [1] : vector<2x8x32xf32> to vector<2x32xf32>
    %c0_20 = arith.constant 0 : index
    %c0_21 = arith.constant 0 : index
    %41 = vector.load %arg7[%c0_20, %c0_21] : memref<2x32xf32, #tpu.memory_space<vmem>>, vector<2x32xf32>
    tpu.vector_store %arg7[%c0_20, %c0_21], %40 {strides = array<i32>} : memref<2x32xf32, #tpu.memory_space<vmem>>, vector<2x32xf32>,
    %c0_22 = arith.constant 0 : index
    %c0_23 = arith.constant 0 : index
    %42 = vector.load %arg8[%c0_22, %c0_23] : memref<2x8xf32, #tpu.memory_space<vmem>>, vector<2x8xf32>
    tpu.vector_store %arg8[%c0_22, %c0_23], %35 {strides = array<i32>} : memref<2x8xf32, #tpu.memory_space<vmem>>, vector<2x8xf32>,
    return
  }
  func.func @transform_0(%arg0: i32) -> (i32, i32) {
    %c0_i32 = arith.constant 0 : i32
    %c0_i32_0 = arith.constant 0 : i32
    return %arg0, %c0_i32 : i32, i32
  }
  func.func @transform_1(%arg0: i32) -> (i32, i32) {
    %c0_i32 = arith.constant 0 : i32
    %c0_i32_0 = arith.constant 0 : i32
    return %arg0, %c0_i32 : i32, i32
  }
  func.func @transform_2(%arg0: i32) -> (i32, i32) {
    %c0_i32 = arith.constant 0 : i32
    %c0_i32_0 = arith.constant 0 : i32
    return %arg0, %c0_i32 : i32, i32
  }
  func.func @transform_3(%arg0: i32) -> (i32, i32) {
    %c0_i32 = arith.constant 0 : i32
    %c0_i32_0 = arith.constant 0 : i32
    %c0_i32_1 = arith.constant 0 : i32
    return %c0_i32, %c0_i32_0 : i32, i32
  }
  func.func @transform_4(%arg0: i32) -> (i32, i32) {
    %c0_i32 = arith.constant 0 : i32
    %c0_i32_0 = arith.constant 0 : i32
    %c0_i32_1 = arith.constant 0 : i32
    return %c0_i32, %c0_i32_0 : i32, i32
  }
  func.func @transform_5(%arg0: i32) -> (i32, i32) {
    %c0_i32 = arith.constant 0 : i32
    %c0_i32_0 = arith.constant 0 : i32
    %c0_i32_1 = arith.constant 0 : i32
    return %c0_i32, %c0_i32_0 : i32, i32
  }
  func.func @transform_6(%arg0: i32) -> (i32, i32) {
    %c0_i32 = arith.constant 0 : i32
    %c0_i32_0 = arith.constant 0 : i32
    return %arg0, %c0_i32 : i32, i32
  }
  func.func @transform_7(%arg0: i32) -> (i32, i32) {
    %c0_i32 = arith.constant 0 : i32
    %c0_i32_0 = arith.constant 0 : i32
    return %arg0, %c0_i32 : i32, i32
  }
}

</mosaic_0001>

<llo_original>
// kernel: tpu_custom_call.1
$region0: #{tpu_custom_call.1}
  #allocation0 [shape = 'u32[]', space=smem, size = 0x4, offset = 0x4, fixed_abs, tag = 'smem constant byte address 0x4 - core index']
  #allocation1 [shape = 'u32[72,128]{1,0:T(1,128)}', space=vmem, size = 0x9000, scoped, tag = 'internal scratch']
  %s0 = inlined_call_operand.vmem [shape: f32[16,32], index: 0, kind: input, shape index: {}]
  %s1 = inlined_call_operand.vmem [shape: f32[2,32], index: 1, kind: input, shape index: {}]
  %s2 = inlined_call_operand.vmem [shape: s32[2,1], index: 2, kind: input, shape index: {}]
  %s3 = inlined_call_operand.vmem [shape: f32[32,16], index: 3, kind: input, shape index: {}]
  %s4 = inlined_call_operand.vmem [shape: f32[32,16], index: 4, kind: input, shape index: {}]
  %s5 = inlined_call_operand.vmem [shape: f32[1,16], index: 5, kind: input, shape index: {}]
  %s6 = inlined_call_operand.hbm [shape: f32[2,32], index: 6, kind: output, shape index: {0}]
  %s7 = inlined_call_operand.hbm [shape: f32[2,8], index: 7, kind: output, shape index: {1}]
  %8 = xla_tuple %s6, %s7
  %s9 = sld [smem:[#allocation0]]
  $region42: #{tpu_custom_call.1} parent=0
    _
  %s11 = ssub.s32 1, %s9
  %s12 = scalar_select 0, %s11, %s9
  $region1: #{tpu_custom_call.1} parent=0
    #allocation2 [shape = 'u8[1024]{0}', space=vmem, size = 0x400, scoped, tag = 'output window, operand 0, single buffered']
    #allocation3 [shape = 's32[1]{0}', space=sflag, size = 0x4, scoped, tag = 'scoped memory for tpu_custom_call.1']
    #allocation4 [shape = 'u8[1024]{0}', space=vmem, size = 0x400, scoped, tag = 'output window, operand 1, single buffered']
    #allocation5 [shape = 's32[1]{0}', space=sflag, size = 0x4, scoped, tag = 'scoped memory for tpu_custom_call.1']
    %13 = vsyncpa [#allocation3], 0
    %14 = vsyncpa [#allocation5], 0
    // Predicated region
    $region2: #{tpu_custom_call.1} parent=1 // pred_check
      _
    $region3: #{tpu_custom_call.1} parent=1 // pred_check_branch
      %16 = sbr.rel (0) target = $region5
    $region4: #{tpu_custom_call.1} parent=1 // pred_region
      _
    $region5: #{tpu_custom_call.1} parent=1 // pred_fallthru
      _
    // Predicated region
    $region6: #{tpu_custom_call.1} parent=1 // pred_check
      _
    $region7: #{tpu_custom_call.1} parent=1 // pred_check_branch
      %18 = sbr.rel (0) target = $region9
    $region8: #{tpu_custom_call.1} parent=1 // pred_region
      _
    $region9: #{tpu_custom_call.1} parent=1 // pred_fallthru
      _
    // Predicated region
    $region10: #{tpu_custom_call.1} parent=1 // pred_check
      _
    $region11: #{tpu_custom_call.1} parent=1 // pred_check_branch
      %20 = sbr.rel (0) target = $region13
    $region12: #{tpu_custom_call.1} parent=1 // pred_region
      _
    $region13: #{tpu_custom_call.1} parent=1 // pred_fallthru
      _
    // Predicated region
    $region14: #{tpu_custom_call.1} parent=1 // pred_check
      _
    $region15: #{tpu_custom_call.1} parent=1 // pred_check_branch
      %22 = sbr.rel (0) target = $region17
    $region16: #{tpu_custom_call.1} parent=1 // pred_region
      _
    $region17: #{tpu_custom_call.1} parent=1 // pred_fallthru
      _
    // Predicated region
    $region18: #{tpu_custom_call.1} parent=1 // pred_check
      _
    $region19: #{tpu_custom_call.1} parent=1 // pred_check_branch
      %24 = sbr.rel (0) target = $region21
    $region20: #{tpu_custom_call.1} parent=1 // pred_region
      _
    $region21: #{tpu_custom_call.1} parent=1 // pred_fallthru
      _
    // Predicated region
    $region22: #{tpu_custom_call.1} parent=1 // pred_check
      _
    $region23: #{tpu_custom_call.1} parent=1 // pred_check_branch
      %26 = sbr.rel (0) target = $region25
    $region24: #{tpu_custom_call.1} parent=1 // pred_region
      _
    $region25: #{tpu_custom_call.1} parent=1 // pred_fallthru
      _
    %v27 = vld [vmem:[%s0] sm:$0xff]
    %v28 = vld [vmem:[%s0 + $0x8] sm:$0xff]
    %v29 = vld [vmem:[%s1] sm:$0x3]
    %v30 = vld [vmem:[%s3] sm:$0xff]
    %v31 = vld [vmem:[%s3 + $0x8] sm:$0xff]
    %v32 = vld [vmem:[%s3 + $0x10] sm:$0xff]
    %v33 = vld [vmem:[%s3 + $0x18] sm:$0xff]
    %vm34 = vcmask 261120
    %v36 = vsel %vm34, %v27, 0
    %v39 = vsel %vm34, %v28, 0
    %41 = vmatpush.msra.mxu0 0.0
    %42 = vmatpush.msra.mxu0 0.0
    %43 = vmatpush.msra.mxu0 0.0
    %44 = vmatpush.msra.mxu0 0.0
    %45 = vmatpush.msra.mxu0 0.0
    %46 = vmatpush.msra.mxu0 0.0
    %47 = vmatpush.msra.mxu0 0.0
    %48 = vmatpush.msra.mxu0 0.0
    %49 = vmatpush.msra.mxu0 0.0
    %50 = vmatpush.msra.mxu0 0.0
    %51 = vmatpush.msra.mxu0 0.0
    %52 = vmatpush.msra.mxu0 0.0
    %53 = vmatpush.msra.mxu0 %v33
    %54 = vmatpush.msra.mxu0 %v32
    %55 = vmatpush.msra.mxu0 %v31
    %56 = vmatpush.msra.mxu0 %v30
    %57 = vmatmul.f32.gmra.mxu0 %v36
    %v58 = vpop.f32.mrf.mxu0
    %v59 = vadd.f32 0.0, %v58
    %60 = vmatmul.f32.gmra.mxu0 %v39
    %v61 = vpop.f32.mrf.mxu0
    %v62 = vadd.f32 0.0, %v61
    %63 = vdwg.mxu0
    %v64 = vld [vmem:[%s4] sm:$0xff]
    %v65 = vld [vmem:[%s4 + $0x8] sm:$0xff]
    %v66 = vld [vmem:[%s4 + $0x10] sm:$0xff]
    %v67 = vld [vmem:[%s4 + $0x18] sm:$0xff]
    %v69 = vsel %vm34, %v29, 0
    %71 = vmatpush.msra.mxu0 0.0
    %72 = vmatpush.msra.mxu0 0.0
    %73 = vmatpush.msra.mxu0 0.0
    %74 = vmatpush.msra.mxu0 0.0
    %75 = vmatpush.msra.mxu0 0.0
    %76 = vmatpush.msra.mxu0 0.0
    %77 = vmatpush.msra.mxu0 0.0
    %78 = vmatpush.msra.mxu0 0.0
    %79 = vmatpush.msra.mxu0 0.0
    %80 = vmatpush.msra.mxu0 0.0
    %81 = vmatpush.msra.mxu0 0.0
    %82 = vmatpush.msra.mxu0 0.0
    %83 = vmatpush.msra.mxu0 %v67
    %84 = vmatpush.msra.mxu0 %v66
    %85 = vmatpush.msra.mxu0 %v65
    %86 = vmatpush.msra.mxu0 %v64
    %87 = vmatmul.f32.gmra.mxu0 %v69
    %v88 = vpop.f32.mrf.mxu0
    %v89 = vadd.f32 0.0, %v88
    %90 = vdwg.mxu0
    %v92 = vrot.slane %v89, 1
    %v93 = vperm.slane %v89, 0
    %v94 = vperm.slane %v92, 0
    %v97 = vadd.f32 %v59, %v93
    %v98 = vadd.f32 %v62, %v94
    %v99 = vmax.f32 %v97, 0.0
    %v100 = vmax.f32 %v98, 0.0
    %v101 = vld [vmem:[%s5] sm:$0x1]
    %v103 = vperm.slane %v101, 0
    %v105 = vmul.f32 %v99, %v103
    %v106 = vmul.f32 %v100, %v103
    %vm107 = vcmask 130048
    %v108 = vsel %vm107, %v105, 0.0
    %109 = vadd.xlane.f32.xlu0 %v108
    %v110 = vpop.xlane.xlu0 %109
    %v111 = vsel %vm107, %v106, 0.0
    %112 = vadd.xlane.f32.xlu0 %v111
    %v113 = vpop.xlane.xlu0 %112
    %v114 = vld [vmem:[%s2] sm:$0x3]
    %v115 = vlaneseq
    %v116 = vand.u32 %v115, 127
    %117 = vset.pattern.permute.xlu0 0
    %118 = vperm.xlu0 %117, %v114
    %v119 = vpop.permute.xlu0 %118
    %vm120 = vcmp.lt.s32.totalorder %v116, %v119
    %v123 = vperm.slane %v110, %v116
    %v124 = vperm.slane %v113, %v116
    %vm125 = vcmask 1041409
    %v126 = vsel %vm125, %v124, %v123
    %vm128 = vcmask 58368
    %v129 = vsel %vm128, %v126, -inf
    %130 = vmax.xlane.f32.xlu0 %v129
    %v131 = vpop.xlane.xlu0 %130
    %v133 = vperm.slane %v131, 0
    %v134 = vperm.slane %v131, 1
    %v137 = vsub.f32 %v110, %v133
    %v138 = vsub.f32 %v113, %v134
    %v139 = vmul.f32 %v137, 1.442695
    %v140 = vpow.pop %v139
    %v141 = vmul.f32 %v138, 1.442695
    %v142 = vpow.pop %v141
    %145 = vset.pattern.permute.xlu0 0
    %146 = vperm.xlu0 %145, %v140
    %v147 = vpop.permute.xlu0 %146
    %148 = vset.pattern.permute.xlu0 0
    %149 = vperm.xlu0 %148, %v142
    %v150 = vpop.permute.xlu0 %149
    %v151 = vperm.slane %v147, %v116
    %v152 = vperm.slane %v150, %v116
    %v153 = vsel %vm125, %v152, %v151
    %v155 = vsel %vm120, %v153, 0.0
    %v156 = vsel %vm128, %v155, 0.0
    %157 = vadd.xlane.f32.xlu0 %v156
    %v158 = vpop.xlane.xlu0 %157
    %vm159 = vcmp.gt.f32.partialorder %v158, 0.0
    %v160 = vsel %vm159, %v158, 1.0
    %v161 = vrcp.pop %v160
    %v162 = vmul.f32 %v160, %v161
    %v163 = vsub.f32 1.0, %v162
    %v164 = vmul.f32 %v161, %v163
    %v165 = vadd.f32 %v161, %v164
    %vm166 = vweird.f32 %v160
    %vm167 = vweird.f32 %v161
    %vm168 = vmor %vm166, %vm167
    %v169 = vsel %vm168, %v161, %v165
    %v170 = vand.u32 2147483647, %v160
    %vm171 = vcmp.eq.f32.partialorder %v170, 8.507059e+37
    %v172 = vand.u32 %v160, 2147483648
    %v173 = vor.u32 1.1754944e-38, %v172
    %v174 = vsel %vm171, %v173, %v169
    %v175 = vmul.f32 %v155, %v174
    %v176 = vperm.slane %v175, 0
    %v177 = vlaneseq
    %v178 = vshrl.u32 %v177, 7
    %180 = vset.pattern.permute.xlu0 %v178
    %181 = vperm.xlu0 %180, %v176
    %v182 = vpop.permute.xlu0 %181
    %v183 = vperm.slane %v175, 1
    %v184 = vlaneseq
    %v185 = vshrl.u32 %v184, 7
    %187 = vset.pattern.permute.xlu0 %v185
    %188 = vperm.xlu0 %187, %v183
    %v189 = vpop.permute.xlu0 %188
    %v190 = vmul.f32 %v27, %v182
    %v191 = vmul.f32 %v28, %v189
    %v192 = vsel %vm34, %v190, 0.0
    %v193 = vrot.slane %v192, 4
    %v194 = vadd.f32 %v192, %v193
    %v195 = vrot.slane %v194, 2
    %v196 = vadd.f32 %v194, %v195
    %v197 = vrot.slane %v196, 1
    %v198 = vadd.f32 %v196, %v197
    %v199 = vsel %vm34, %v191, 0.0
    %v200 = vrot.slane %v199, 4
    %v201 = vadd.f32 %v199, %v200
    %v202 = vrot.slane %v201, 2
    %v203 = vadd.f32 %v201, %v202
    %v204 = vrot.slane %v203, 1
    %v205 = vadd.f32 %v203, %v204
    %v208 = vsel %vm125, %v205, %v198
    %vm210 = vcmask 254976
    %211 = vst.msk [vmem:[#allocation2] sm:$0x3] %vm210, %v208
    %212 = vst.msk [vmem:[#allocation4] sm:$0x3] %vm128, %v175
    // Predicated region
    $region26: #{tpu_custom_call.1} parent=1 // pred_check
      _
    $region27: #{tpu_custom_call.1} parent=1 // pred_check_branch
      %214 = sbr.rel (0) target = $region29
    $region28: #{tpu_custom_call.1} parent=1 // pred_region
      %216 = vsyncadd [#allocation3], 0
      %s218 = sshll.u32 [#allocation2], 4
      %s219 = int_to_ptr.vmem [resolvable:$true] %s218
      %s220 = sshll.u32 %s6, 4
      %s221 = int_to_ptr.hbm [resolvable:$true] %s220
      %223 = dma.vmem_to_hbm [thread:$0]  %s219, 32, %s221, [#allocation3]
    $region29: #{tpu_custom_call.1} parent=1 // pred_fallthru
      _
    // Predicated region
    $region30: #{tpu_custom_call.1} parent=1 // pred_check
      _
    $region31: #{tpu_custom_call.1} parent=1 // pred_check_branch
      %225 = sbr.rel (0) target = $region33
    $region32: #{tpu_custom_call.1} parent=1 // pred_region
      %227 = vsyncadd [#allocation5], 0
      %s229 = sshll.u32 [#allocation4], 4
      %s230 = int_to_ptr.vmem [resolvable:$true] %s229
      %s231 = sshll.u32 %s7, 4
      %s232 = int_to_ptr.hbm [resolvable:$true] %s231
      %234 = dma.vmem_to_hbm [thread:$0]  %s230, 32, %s232, [#allocation5]
    $region33: #{tpu_custom_call.1} parent=1 // pred_fallthru
      _
    // Predicated region
    $region34: #{tpu_custom_call.1} parent=1 // pred_check
      _
    $region35: #{tpu_custom_call.1} parent=1 // pred_check_branch
      %236 = sbr.rel (0) target = $region37
    $region36: #{tpu_custom_call.1} parent=1 // pred_region
      %238 = dma.done [#allocation3], 32
    $region37: #{tpu_custom_call.1} parent=1 // pred_fallthru
      _
    // Predicated region
    $region38: #{tpu_custom_call.1} parent=1 // pred_check
      _
    $region39: #{tpu_custom_call.1} parent=1 // pred_check_branch
      %240 = sbr.rel (0) target = $region41
    $region40: #{tpu_custom_call.1} parent=1 // pred_region
      %242 = dma.done [#allocation5], 32
    $region41: #{tpu_custom_call.1} parent=1 // pred_fallthru
      _
    %243 = vsyncpa [#allocation3], 1
    %244 = vsyncpa [#allocation5], 1

</llo_original>
